<compile_context>
chip_gen: v5e
topology: v5e:2x2
jax: 0.10.0
libtpu: 0.0.40
codegen_flags: <defaults>
</compile_context>

<pallas_src>
import functools

import jax
import jax.numpy as jnp
from jax.experimental import pallas as pl
from jax.experimental.pallas import tpu as pltpu


def _round_up(x, m):
    return ((x + m - 1) // m) * m


def rnn_scan_kernel(x_ref, h0_ref, wih_ref, whh_ref, b_ref,
                    out_ref, h_scratch, pre_scratch, *, t_chunk, b_pad):
    c = pl.program_id(0)

    # Initialize the carried state from h0 on the first chunk only.
    @pl.when(c == 0)
    def _():
        h_scratch[...] = h0_ref[...].astype(jnp.float32)

    # (1) Chunk-wide input projection, written straight into VMEM scratch so
    #     it never sits in vregs: one (t_chunk*Bp, Ip) x (Ip, Hp) MXU matmul,
    #     bias folded in once per chunk.
    pre_scratch[...] = (jnp.dot(x_ref[...], wih_ref[...],
                                preferred_element_type=jnp.float32)
                        + b_ref[...])                     # (t_chunk*Bp, Hp) f32

    # (2) Sequential recurrence inside the chunk. Only h @ W_hh + pre_x[t] and
    #     a tanh sit on the serial path; pre_x rows are read back from scratch.
    w_hh = whh_ref[...]                                   # (Hp, Hp) bf16, resident

    def step(row, h):
        rec = jnp.dot(h.astype(w_hh.dtype), w_hh,
                      preferred_element_type=jnp.float32)
        h_new = jnp.tanh(pre_scratch[pl.ds(row, b_pad), :] + rec)
        out_ref[pl.ds(row, b_pad), :] = h_new.astype(out_ref.dtype)
        return h_new

    if t_chunk <= 8:
        # Small chunk: full static unroll, static slice offsets.
        h = h_scratch[...]
        for t in range(t_chunk):
            h = step(t * b_pad, h)
        h_scratch[...] = h
    else:
        # Large chunk: bounded code size, aligned dynamic slices.
        def body(t, h):
            return step(pl.multiple_of(t * b_pad, b_pad), h)

        h_scratch[...] = jax.lax.fori_loop(
            0, t_chunk, body, h_scratch[...], unroll=min(t_chunk, 8))


def prepare_rnn_params(w_ih, w_hh, b, *, compute_dtype=jnp.bfloat16):
    """One-time padding of the cell parameters to lane/sublane-dense tiles.

    w_ih: [I, H], w_hh: [H, H], b: [1, H] (b_ih + b_hh, nn.RNNCell style,
    pre-transposed). Do this once, reuse across calls.
    """
    I, H = w_ih.shape
    Ip = _round_up(I, 128)
    Hp = _round_up(H, 128)
    wih_p = jnp.zeros((Ip, Hp), compute_dtype).at[:I, :H].set(
        w_ih.astype(compute_dtype))
    whh_p = jnp.zeros((Hp, Hp), compute_dtype).at[:H, :H].set(
        w_hh.astype(compute_dtype))
    b_p = jnp.zeros((1, Hp), jnp.float32).at[:, :H].set(b.astype(jnp.float32))
    return {"wih": wih_p, "whh": whh_p, "b": b_p,
            "in_dim": I, "hidden": H, "compute_dtype": compute_dtype}


def rnn_layer(inp, h0, params, *, t_chunk=None):
    """inp: [T, B, I], h0: [B, H], params from prepare_rnn_params().
    Returns (outputs [T, B, H], final_state [B, H])."""
    T, B, I = inp.shape
    H = params["hidden"]
    assert params["in_dim"] == I and h0.shape == (B, H)
    out_dtype = inp.dtype
    cdt = params["compute_dtype"]

    wih_p, whh_p, b_p = params["wih"], params["whh"], params["b"]
    Ip, Hp = wih_p.shape
    Bp = _round_up(B, 8)

    # Chunk size: one grid step for short sequences; otherwise enough rows
    # (t_chunk*Bp >= 256) to fill the 256-deep MXU on v6e/v7x.
    if t_chunk is None:
        t_chunk = max(32, pl.cdiv(256, Bp))
    t_chunk = max(1, min(t_chunk, T))
    n_chunks = pl.cdiv(T, t_chunk)
    Tp = n_chunks * t_chunk

    # Zero-pad the streamed input. Padded H columns stay exactly 0 through the
    # scan; padded batch rows carry junk but are sliced off below.
    x_p = jnp.zeros((Tp, Bp, Ip), cdt).at[:T, :B, :I].set(inp.astype(cdt))
    h0_p = jnp.zeros((Bp, Hp), jnp.float32).at[:B, :H].set(
        h0.astype(jnp.float32))

    # Time-major 2D layout: row index = t * Bp + b (lane-dense slabs).
    x2d = x_p.reshape(Tp * Bp, Ip)

    grid_spec = pltpu.PrefetchScalarGridSpec(
        num_scalar_prefetch=0,
        grid=(n_chunks,),
        in_specs=[
            pl.BlockSpec((t_chunk * Bp, Ip), lambda c: (c, 0)),  # x chunk
            pl.BlockSpec((Bp, Hp), lambda c: (0, 0)),            # h0 (c==0 only)
            pl.BlockSpec((Ip, Hp), lambda c: (0, 0)),            # W_ih resident
            pl.BlockSpec((Hp, Hp), lambda c: (0, 0)),            # W_hh resident
            pl.BlockSpec((1, Hp), lambda c: (0, 0)),             # bias resident
        ],
        out_specs=pl.BlockSpec((t_chunk * Bp, Hp), lambda c: (c, 0)),
        scratch_shapes=[
            pltpu.VMEM((Bp, Hp), jnp.float32),            # carried state
            pltpu.VMEM((t_chunk * Bp, Hp), jnp.float32),  # pre_x chunk
        ],
    )

    # VMEM budget from the actual footprint (+ headroom), not a blanket 64 MiB
    # (which would equal v7x's entire physical per-TC VMEM).
    out_bytes = jnp.dtype(out_dtype).itemsize
    cdt_bytes = jnp.dtype(cdt).itemsize
    footprint = (
        (Ip * Hp + Hp * Hp) * cdt_bytes            # resident weights
        + Hp * 4 + Bp * Hp * 4                      # bias + h0
        + 2 * t_chunk * Bp * Ip * cdt_bytes         # double-buffered x chunk
        + 2 * t_chunk * Bp * Hp * out_bytes         # double-buffered out chunk
        + Bp * Hp * 4 + t_chunk * Bp * Hp * 4       # h + pre_x scratch
    )
    vmem_limit = int(footprint + (4 << 20))

    out2d = pl.pallas_call(
        functools.partial(rnn_scan_kernel, t_chunk=t_chunk, b_pad=Bp),
        out_shape=jax.ShapeDtypeStruct((Tp * Bp, Hp), out_dtype),
        grid_spec=grid_spec,
        compiler_params=pltpu.CompilerParams(
            dimension_semantics=("arbitrary",),   # recurrent carry => sequential
            vmem_limit_bytes=vmem_limit,
        ),
    )(x2d, h0_p, wih_p, whh_p, b_p)

    outputs = out2d.reshape(Tp, Bp, Hp)[:T, :B, :H]
    # Final state comes from outputs[T-1]; the carried scratch may have been
    # advanced past T with zero inputs when t_chunk does not divide T.
    final_state = outputs[T - 1]
    return outputs, final_state


def rnn_layer_ref_f32(inp, h0, w_ih, w_hh, b):
    """Pure-f32 JAX reference mirroring the PyTorch Layer.forward loop."""
    def step(h, x_t):
        h_new = jnp.tanh(x_t @ w_ih + h @ w_hh + b[0])
        return h_new, h_new
    hT, outs = jax.lax.scan(step, h0, inp)
    return outs, hT


def rnn_layer_ref_mixed(inp, h0, w_ih, w_hh, b):
    """Reference mirroring the kernel's bf16-input / f32-accumulate numerics."""
    wih_bf = w_ih.astype(jnp.bfloat16)
    whh_bf = w_hh.astype(jnp.bfloat16)

    def step(h, x_t):
        pre = (jnp.dot(x_t.astype(jnp.bfloat16), wih_bf,
                       preferred_element_type=jnp.float32)
               + b[0]
               + jnp.dot(h.astype(jnp.bfloat16), whh_bf,
                         preferred_element_type=jnp.float32))
        h_new = jnp.tanh(pre)
        return h_new, h_new

    hT, outs = jax.lax.scan(step, h0, inp)
    return outs, hT


if __name__ == "__main__":
    # Small shapes implied by the module: seq=8, batch=2, input=32, hidden=32.
    T, B, I, H = 8, 2, 32, 32
    key = jax.random.PRNGKey(0)
    k1, k2, k3, k4, k5, k6 = jax.random.split(key, 6)

    inp = jax.random.normal(k1, (T, B, I), dtype=jnp.float32)
    h0 = jax.random.normal(k2, (B, H), dtype=jnp.float32)
    # Deterministic cell parameters (nn.RNNCell-style shapes, pre-transposed).
    w_ih = 0.1 * jax.random.normal(k3, (I, H), dtype=jnp.float32)
    w_hh = 0.1 * jax.random.normal(k4, (H, H), dtype=jnp.float32)
    b_ih = 0.1 * jax.random.normal(k5, (1, H), dtype=jnp.float32)
    b_hh = 0.1 * jax.random.normal(k6, (1, H), dtype=jnp.float32)
    b = b_ih + b_hh

    params = prepare_rnn_params(w_ih, w_hh, b)   # one-time weight padding

    # Default t_chunk -> whole scan in one grid invocation at T=8.
    outputs, final_state = rnn_layer(inp, h0, params)
    jax.block_until_ready((outputs, final_state))

    assert outputs.shape == (T, B, H)
    assert final_state.shape == (B, H)

    # Tight check against a reference using the same mixed-precision math.
    mref_out, mref_hT = rnn_layer_ref_mixed(inp, h0, w_ih, w_hh, b)
    assert jnp.allclose(outputs, mref_out, atol=1e-4, rtol=1e-4)
    assert jnp.allclose(final_state, mref_hT, atol=1e-4, rtol=1e-4)

    # Looser check against the exact f32 module semantics (bf16 MXU inputs).
    fref_out, fref_hT = rnn_layer_ref_f32(inp, h0, w_ih, w_hh, b)
    assert jnp.allclose(outputs, fref_out, atol=3e-2, rtol=3e-2)
    assert jnp.allclose(final_state, fref_hT, atol=3e-2, rtol=3e-2)

    # The stacked outputs' last timestep must equal the returned final state.
    assert jnp.allclose(outputs[-1], final_state)

    # Exercise the non-dividing-chunk path (grid > 1, static-unroll branch).
    out_c3, fin_c3 = rnn_layer(inp, h0, params, t_chunk=3)
    jax.block_until_ready((out_c3, fin_c3))
    assert jnp.allclose(out_c3, mref_out, atol=1e-4, rtol=1e-4)
    assert jnp.allclose(fin_c3, mref_hT, atol=1e-4, rtol=1e-4)

    # Exercise the long-sequence path (t_chunk=32 -> fori_loop recurrence).
    T2 = 40
    inp2 = jax.random.normal(jax.random.PRNGKey(1), (T2, B, I), jnp.float32)
    out2, fin2 = rnn_layer(inp2, h0, params)
    jax.block_until_ready((out2, fin2))
    mref_out2, mref_hT2 = rnn_layer_ref_mixed(inp2, h0, w_ih, w_hh, b)
    assert jnp.allclose(out2, mref_out2, atol=1e-3, rtol=1e-3)
    assert jnp.allclose(fin2, mref_hT2, atol=1e-3, rtol=1e-3)

    print("KERNEL_OK")
</pallas_src>

<mosaic_0001>
module attributes {stable_mosaic.version = 11 : i64} {
  func.func @rnn_scan_kernel(%arg0: i32, %arg1: memref<64x128xbf16, #tpu.memory_space<vmem>>, %arg2: memref<8x128xf32, #tpu.memory_space<vmem>>, %arg3: memref<128x128xbf16, #tpu.memory_space<vmem>>, %arg4: memref<128x128xbf16, #tpu.memory_space<vmem>>, %arg5: memref<1x128xf32, #tpu.memory_space<vmem>>, %arg6: memref<64x128xf32, #tpu.memory_space<vmem>>, %arg7: memref<8x128xf32, #tpu.memory_space<vmem>>, %arg8: memref<64x128xf32, #tpu.memory_space<vmem>>) attributes {dimension_semantics = [#tpu.dimension_semantics<arbitrary>], iteration_bounds = array<i64: 1>, scalar_prefetch = 0 : i64, scratch_operands = 2 : i64, tpu.core_type = #tpu.core_type<tc>, window_params = [{transform_indices = @transform_0, window_bounds = array<i64: 64, 128>}, {pipeline_mode = #tpu.pipeline_mode<synchronous>, transform_indices = @transform_1, window_bounds = array<i64: 8, 128>}, {pipeline_mode = #tpu.pipeline_mode<synchronous>, transform_indices = @transform_2, window_bounds = array<i64: 128, 128>}, {pipeline_mode = #tpu.pipeline_mode<synchronous>, transform_indices = @transform_3, window_bounds = array<i64: 128, 128>}, {pipeline_mode = #tpu.pipeline_mode<synchronous>, transform_indices = @transform_4, window_bounds = array<i64: 1, 128>}, {transform_indices = @transform_5, window_bounds = array<i64: 64, 128>}]} {
    %c0_i32 = arith.constant 0 : i32
    %0 = arith.cmpi eq, %arg0, %c0_i32 : i32
    %1 = arith.extui %0 : i1 to i32
    %c0_i32_0 = arith.constant 0 : i32
    %2 = arith.cmpi ne, %1, %c0_i32_0 : i32
    scf.if %2 {
      %c0_47 = arith.constant 0 : index
      %c0_48 = arith.constant 0 : index
      %61 = vector.load %arg2[%c0_47, %c0_48] : memref<8x128xf32, #tpu.memory_space<vmem>>, vector<8x128xf32>
      %c0_49 = arith.constant 0 : index
      %c0_50 = arith.constant 0 : index
      %62 = vector.load %arg7[%c0_49, %c0_50] : memref<8x128xf32, #tpu.memory_space<vmem>>, vector<8x128xf32>
      tpu.vector_store %arg7[%c0_49, %c0_50], %61 {strides = array<i32>} : memref<8x128xf32, #tpu.memory_space<vmem>>, vector<8x128xf32>,
    } else {
    }
    %c0 = arith.constant 0 : index
    %c0_1 = arith.constant 0 : index
    %3 = vector.load %arg1[%c0, %c0_1] : memref<64x128xbf16, #tpu.memory_space<vmem>>, vector<64x128xbf16>
    %c0_2 = arith.constant 0 : index
    %c0_3 = arith.constant 0 : index
    %4 = vector.load %arg3[%c0_2, %c0_3] : memref<128x128xbf16, #tpu.memory_space<vmem>>, vector<128x128xbf16>
    %cst = arith.constant dense<0.000000e+00> : vector<64x128xf32>
    %5 = tpu.matmul %3, %4, %cst {dimension_numbers = #tpu.dot_dimension_numbers<[1], [0], [0], [1], [0, 0, 1, 1], [], []>} : vector<64x128xbf16>, vector<128x128xbf16>, vector<64x128xf32> -> vector<64x128xf32>
    %c0_4 = arith.constant 0 : index
    %c0_5 = arith.constant 0 : index
    %6 = vector.load %arg5[%c0_4, %c0_5] : memref<1x128xf32, #tpu.memory_space<vmem>>, vector<1x128xf32>
    %7 = vector.broadcast %6 : vector<1x128xf32> to vector<64x128xf32>
    %8 = arith.addf %5, %7 : vector<64x128xf32>
    %c0_6 = arith.constant 0 : index
    %c0_7 = arith.constant 0 : index
    %9 = vector.load %arg8[%c0_6, %c0_7] : memref<64x128xf32, #tpu.memory_space<vmem>>, vector<64x128xf32>
    tpu.vector_store %arg8[%c0_6, %c0_7], %8 {strides = array<i32>} : memref<64x128xf32, #tpu.memory_space<vmem>>, vector<64x128xf32>,
    %c0_8 = arith.constant 0 : index
    %c0_9 = arith.constant 0 : index
    %10 = vector.load %arg4[%c0_8, %c0_9] : memref<128x128xbf16, #tpu.memory_space<vmem>>, vector<128x128xbf16>
    %c0_10 = arith.constant 0 : index
    %c0_11 = arith.constant 0 : index
    %11 = vector.load %arg7[%c0_10, %c0_11] : memref<8x128xf32, #tpu.memory_space<vmem>>, vector<8x128xf32>
    %12 = arith.truncf %11 : vector<8x128xf32> to vector<8x128xbf16>
    %cst_12 = arith.constant dense<0.000000e+00> : vector<8x128xf32>
    %13 = tpu.matmul %12, %10, %cst_12 {dimension_numbers = #tpu.dot_dimension_numbers<[1], [0], [0], [1], [0, 0, 1, 1], [], []>} : vector<8x128xbf16>, vector<128x128xbf16>, vector<8x128xf32> -> vector<8x128xf32>
    %c0_13 = arith.constant 0 : index
    %c0_14 = arith.constant 0 : index
    %14 = vector.load %arg8[%c0_13, %c0_14] : memref<64x128xf32, #tpu.memory_space<vmem>>, vector<8x128xf32>
    %15 = arith.addf %14, %13 : vector<8x128xf32>
    %16 = math.tanh %15 : vector<8x128xf32>
    %c0_15 = arith.constant 0 : index
    %c0_16 = arith.constant 0 : index
    %17 = vector.load %arg6[%c0_15, %c0_16] : memref<64x128xf32, #tpu.memory_space<vmem>>, vector<8x128xf32>
    tpu.vector_store %arg6[%c0_15, %c0_16], %16 {strides = array<i32>} : memref<64x128xf32, #tpu.memory_space<vmem>>, vector<8x128xf32>,
    %18 = arith.truncf %16 : vector<8x128xf32> to vector<8x128xbf16>
    %cst_17 = arith.constant dense<0.000000e+00> : vector<8x128xf32>
    %19 = tpu.matmul %18, %10, %cst_17 {dimension_numbers = #tpu.dot_dimension_numbers<[1], [0], [0], [1], [0, 0, 1, 1], [], []>} : vector<8x128xbf16>, vector<128x128xbf16>, vector<8x128xf32> -> vector<8x128xf32>
    %c8 = arith.constant 8 : index
    %c0_18 = arith.constant 0 : index
    %20 = vector.load %arg8[%c8, %c0_18] : memref<64x128xf32, #tpu.memory_space<vmem>>, vector<8x128xf32>
    %21 = arith.addf %20, %19 : vector<8x128xf32>
    %22 = math.tanh %21 : vector<8x128xf32>
    %c8_19 = arith.constant 8 : index
    %c0_20 = arith.constant 0 : index
    %23 = vector.load %arg6[%c8_19, %c0_20] : memref<64x128xf32, #tpu.memory_space<vmem>>, vector<8x128xf32>
    tpu.vector_store %arg6[%c8_19, %c0_20], %22 {strides = array<i32>} : memref<64x128xf32, #tpu.memory_space<vmem>>, vector<8x128xf32>,
    %24 = arith.truncf %22 : vector<8x128xf32> to vector<8x128xbf16>
    %cst_21 = arith.constant dense<0.000000e+00> : vector<8x128xf32>
    %25 = tpu.matmul %24, %10, %cst_21 {dimension_numbers = #tpu.dot_dimension_numbers<[1], [0], [0], [1], [0, 0, 1, 1], [], []>} : vector<8x128xbf16>, vector<128x128xbf16>, vector<8x128xf32> -> vector<8x128xf32>
    %c16 = arith.constant 16 : index
    %c0_22 = arith.constant 0 : index
    %26 = vector.load %arg8[%c16, %c0_22] : memref<64x128xf32, #tpu.memory_space<vmem>>, vector<8x128xf32>
    %27 = arith.addf %26, %25 : vector<8x128xf32>
    %28 = math.tanh %27 : vector<8x128xf32>
    %c16_23 = arith.constant 16 : index
    %c0_24 = arith.constant 0 : index
    %29 = vector.load %arg6[%c16_23, %c0_24] : memref<64x128xf32, #tpu.memory_space<vmem>>, vector<8x128xf32>
    tpu.vector_store %arg6[%c16_23, %c0_24], %28 {strides = array<i32>} : memref<64x128xf32, #tpu.memory_space<vmem>>, vector<8x128xf32>,
    %30 = arith.truncf %28 : vector<8x128xf32> to vector<8x128xbf16>
    %cst_25 = arith.constant dense<0.000000e+00> : vector<8x128xf32>
    %31 = tpu.matmul %30, %10, %cst_25 {dimension_numbers = #tpu.dot_dimension_numbers<[1], [0], [0], [1], [0, 0, 1, 1], [], []>} : vector<8x128xbf16>, vector<128x128xbf16>, vector<8x128xf32> -> vector<8x128xf32>
    %c24 = arith.constant 24 : index
    %c0_26 = arith.constant 0 : index
    %32 = vector.load %arg8[%c24, %c0_26] : memref<64x128xf32, #tpu.memory_space<vmem>>, vector<8x128xf32>
    %33 = arith.addf %32, %31 : vector<8x128xf32>
    %34 = math.tanh %33 : vector<8x128xf32>
    %c24_27 = arith.constant 24 : index
    %c0_28 = arith.constant 0 : index
    %35 = vector.load %arg6[%c24_27, %c0_28] : memref<64x128xf32, #tpu.memory_space<vmem>>, vector<8x128xf32>
    tpu.vector_store %arg6[%c24_27, %c0_28], %34 {strides = array<i32>} : memref<64x128xf32, #tpu.memory_space<vmem>>, vector<8x128xf32>,
    %36 = arith.truncf %34 : vector<8x128xf32> to vector<8x128xbf16>
    %cst_29 = arith.constant dense<0.000000e+00> : vector<8x128xf32>
    %37 = tpu.matmul %36, %10, %cst_29 {dimension_numbers = #tpu.dot_dimension_numbers<[1], [0], [0], [1], [0, 0, 1, 1], [], []>} : vector<8x128xbf16>, vector<128x128xbf16>, vector<8x128xf32> -> vector<8x128xf32>
    %c32 = arith.constant 32 : index
    %c0_30 = arith.constant 0 : index
    %38 = vector.load %arg8[%c32, %c0_30] : memref<64x128xf32, #tpu.memory_space<vmem>>, vector<8x128xf32>
    %39 = arith.addf %38, %37 : vector<8x128xf32>
    %40 = math.tanh %39 : vector<8x128xf32>
    %c32_31 = arith.constant 32 : index
    %c0_32 = arith.constant 0 : index
    %41 = vector.load %arg6[%c32_31, %c0_32] : memref<64x128xf32, #tpu.memory_space<vmem>>, vector<8x128xf32>
    tpu.vector_store %arg6[%c32_31, %c0_32], %40 {strides = array<i32>} : memref<64x128xf32, #tpu.memory_space<vmem>>, vector<8x128xf32>,
    %42 = arith.truncf %40 : vector<8x128xf32> to vector<8x128xbf16>
    %cst_33 = arith.constant dense<0.000000e+00> : vector<8x128xf32>
    %43 = tpu.matmul %42, %10, %cst_33 {dimension_numbers = #tpu.dot_dimension_numbers<[1], [0], [0], [1], [0, 0, 1, 1], [], []>} : vector<8x128xbf16>, vector<128x128xbf16>, vector<8x128xf32> -> vector<8x128xf32>
    %c40 = arith.constant 40 : index
    %c0_34 = arith.constant 0 : index
    %44 = vector.load %arg8[%c40, %c0_34] : memref<64x128xf32, #tpu.memory_space<vmem>>, vector<8x128xf32>
    %45 = arith.addf %44, %43 : vector<8x128xf32>
    %46 = math.tanh %45 : vector<8x128xf32>
    %c40_35 = arith.constant 40 : index
    %c0_36 = arith.constant 0 : index
    %47 = vector.load %arg6[%c40_35, %c0_36] : memref<64x128xf32, #tpu.memory_space<vmem>>, vector<8x128xf32>
    tpu.vector_store %arg6[%c40_35, %c0_36], %46 {strides = array<i32>} : memref<64x128xf32, #tpu.memory_space<vmem>>, vector<8x128xf32>,
    %48 = arith.truncf %46 : vector<8x128xf32> to vector<8x128xbf16>
    %cst_37 = arith.constant dense<0.000000e+00> : vector<8x128xf32>
    %49 = tpu.matmul %48, %10, %cst_37 {dimension_numbers = #tpu.dot_dimension_numbers<[1], [0], [0], [1], [0, 0, 1, 1], [], []>} : vector<8x128xbf16>, vector<128x128xbf16>, vector<8x128xf32> -> vector<8x128xf32>
    %c48 = arith.constant 48 : index
    %c0_38 = arith.constant 0 : index
    %50 = vector.load %arg8[%c48, %c0_38] : memref<64x128xf32, #tpu.memory_space<vmem>>, vector<8x128xf32>
    %51 = arith.addf %50, %49 : vector<8x128xf32>
    %52 = math.tanh %51 : vector<8x128xf32>
    %c48_39 = arith.constant 48 : index
    %c0_40 = arith.constant 0 : index
    %53 = vector.load %arg6[%c48_39, %c0_40] : memref<64x128xf32, #tpu.memory_space<vmem>>, vector<8x128xf32>
    tpu.vector_store %arg6[%c48_39, %c0_40], %52 {strides = array<i32>} : memref<64x128xf32, #tpu.memory_space<vmem>>, vector<8x128xf32>,
    %54 = arith.truncf %52 : vector<8x128xf32> to vector<8x128xbf16>
    %cst_41 = arith.constant dense<0.000000e+00> : vector<8x128xf32>
    %55 = tpu.matmul %54, %10, %cst_41 {dimension_numbers = #tpu.dot_dimension_numbers<[1], [0], [0], [1], [0, 0, 1, 1], [], []>} : vector<8x128xbf16>, vector<128x128xbf16>, vector<8x128xf32> -> vector<8x128xf32>
    %c56 = arith.constant 56 : index
    %c0_42 = arith.constant 0 : index
    %56 = vector.load %arg8[%c56, %c0_42] : memref<64x128xf32, #tpu.memory_space<vmem>>, vector<8x128xf32>
    %57 = arith.addf %56, %55 : vector<8x128xf32>
    %58 = math.tanh %57 : vector<8x128xf32>
    %c56_43 = arith.constant 56 : index
    %c0_44 = arith.constant 0 : index
    %59 = vector.load %arg6[%c56_43, %c0_44] : memref<64x128xf32, #tpu.memory_space<vmem>>, vector<8x128xf32>
    tpu.vector_store %arg6[%c56_43, %c0_44], %58 {strides = array<i32>} : memref<64x128xf32, #tpu.memory_space<vmem>>, vector<8x128xf32>,
    %c0_45 = arith.constant 0 : index
    %c0_46 = arith.constant 0 : index
    %60 = vector.load %arg7[%c0_45, %c0_46] : memref<8x128xf32, #tpu.memory_space<vmem>>, vector<8x128xf32>
    tpu.vector_store %arg7[%c0_45, %c0_46], %58 {strides = array<i32>} : memref<8x128xf32, #tpu.memory_space<vmem>>, vector<8x128xf32>,
    return
  }
  func.func @transform_0(%arg0: i32) -> (i32, i32) {
    %c0_i32 = arith.constant 0 : i32
    %c0_i32_0 = arith.constant 0 : i32
    return %arg0, %c0_i32 : i32, i32
  }
  func.func @transform_1(%arg0: i32) -> (i32, i32) {
    %c0_i32 = arith.constant 0 : i32
    %c0_i32_0 = arith.constant 0 : i32
    %c0_i32_1 = arith.constant 0 : i32
    return %c0_i32, %c0_i32_0 : i32, i32
  }
  func.func @transform_2(%arg0: i32) -> (i32, i32) {
    %c0_i32 = arith.constant 0 : i32
    %c0_i32_0 = arith.constant 0 : i32
    %c0_i32_1 = arith.constant 0 : i32
    return %c0_i32, %c0_i32_0 : i32, i32
  }
  func.func @transform_3(%arg0: i32) -> (i32, i32) {
    %c0_i32 = arith.constant 0 : i32
    %c0_i32_0 = arith.constant 0 : i32
    %c0_i32_1 = arith.constant 0 : i32
    return %c0_i32, %c0_i32_0 : i32, i32
  }
  func.func @transform_4(%arg0: i32) -> (i32, i32) {
    %c0_i32 = arith.constant 0 : i32
    %c0_i32_0 = arith.constant 0 : i32
    %c0_i32_1 = arith.constant 0 : i32
    return %c0_i32, %c0_i32_0 : i32, i32
  }
  func.func @transform_5(%arg0: i32) -> (i32, i32) {
    %c0_i32 = arith.constant 0 : i32
    %c0_i32_0 = arith.constant 0 : i32
    return %arg0, %c0_i32 : i32, i32
  }
}

</mosaic_0001>

<llo_original>
// kernel: tpu_custom_call.1
$region0: #{tpu_custom_call.1}
  #allocation0 [shape = 'u32[]', space=smem, size = 0x4, offset = 0x4, fixed_abs, tag = 'smem constant byte address 0x4 - core index']
  #allocation1 [shape = 'u32[72,128]{1,0:T(1,128)}', space=vmem, size = 0x9000, scoped, tag = 'internal scratch']
  #allocation2 [shape = 'f32[8,128]{1,0:T(8,128)}', space=vmem, size = 0x1000, scoped, tag = 'scratch operand']
  #allocation3 [shape = 'f32[64,128]{1,0:T(8,128)}', space=vmem, size = 0x8000, scoped, tag = 'scratch operand']
  %s0 = inlined_call_operand.hbm [shape: bf16[64,128], index: 0, kind: input, shape index: {}]
  %s1 = inlined_call_operand.hbm [shape: f32[8,128], index: 1, kind: input, shape index: {}]
  %s2 = inlined_call_operand.hbm [shape: bf16[128,128], index: 2, kind: input, shape index: {}]
  %s3 = inlined_call_operand.hbm [shape: bf16[128,128], index: 3, kind: input, shape index: {}]
  %s4 = inlined_call_operand.vmem [shape: f32[1,128], index: 4, kind: input, shape index: {}]
  %s5 = inlined_call_operand.hbm [shape: f32[64,128], index: 5, kind: output, shape index: {}]
  %s6 = sld [smem:[#allocation0]]
  $region50: #{tpu_custom_call.1} parent=0
    _
  %s8 = ssub.s32 1, %s6
  %s9 = scalar_select 0, %s8, %s6
  $region1: #{tpu_custom_call.1} parent=0
    #allocation4 [shape = 'u8[16384]{0}', space=vmem, size = 0x4000, scoped, tag = 'input window, operand 0, single buffered']
    #allocation5 [shape = 's32[1]{0}', space=sflag, size = 0x4, scoped, tag = 'scoped memory for tpu_custom_call.1']
    #allocation6 [shape = 's32[1]{0}', space=sflag, size = 0x4, scoped, tag = 'scoped memory for tpu_custom_call.1']
    #allocation7 [shape = 'u8[4096]{0}', space=vmem, size = 0x1000, scoped, tag = 'input window, operand 1, single buffered']
    #allocation8 [shape = 's32[1]{0}', space=sflag, size = 0x4, scoped, tag = 'scoped memory for tpu_custom_call.1']
    #allocation9 [shape = 'u8[32768]{0}', space=vmem, size = 0x8000, scoped, tag = 'input window, operand 2, single buffered']
    #allocation10 [shape = 'u8[32768]{0}', space=vmem, size = 0x8000, scoped, tag = 'input window, operand 3, single buffered']
    #allocation11 [shape = 's32[1]{0}', space=sflag, size = 0x4, scoped, tag = 'scoped memory for tpu_custom_call.1']
    #allocation12 [shape = 'u8[32768]{0}', space=vmem, size = 0x8000, scoped, tag = 'output window, operand 0, single buffered']
    %10 = vsyncpa [#allocation5], 0
    %11 = vsyncpa [#allocation8], 0
    %12 = vsyncpa [#allocation11], 0
    %13 = vsyncpa [#allocation6], 0
    // Predicated region
    $region2: #{tpu_custom_call.1} parent=1 // pred_check
      _
    $region3: #{tpu_custom_call.1} parent=1 // pred_check_branch
      %15 = sbr.rel (0) target = $region5
    $region4: #{tpu_custom_call.1} parent=1 // pred_region
      %17 = vsyncadd [#allocation5], 0
      %s18 = sshll.u32 %s0, 4
      %s19 = int_to_ptr.hbm [resolvable:$true] %s18
      %s20 = sshll.u32 [#allocation4], 4
      %s21 = int_to_ptr.vmem [resolvable:$true] %s20
      %26 = dma.hbm_to_vmem [thread:$0]  %s19, 512, %s21, [#allocation5], 64, 64, 4
    $region5: #{tpu_custom_call.1} parent=1 // pred_fallthru
      _
    // Predicated region
    $region6: #{tpu_custom_call.1} parent=1 // pred_check
      _
    $region7: #{tpu_custom_call.1} parent=1 // pred_check_branch
      %28 = sbr.rel (0) target = $region9
    $region8: #{tpu_custom_call.1} parent=1 // pred_region
      %30 = vsyncadd [#allocation8], 0
      %s32 = sshll.u32 %s1, 4
      %s33 = int_to_ptr.hbm [resolvable:$true] %s32
      %s34 = sshll.u32 [#allocation7], 4
      %s35 = int_to_ptr.vmem [resolvable:$true] %s34
      %37 = dma.hbm_to_vmem [thread:$0]  %s33, 128, %s35, [#allocation8]
    $region9: #{tpu_custom_call.1} parent=1 // pred_fallthru
      _
    // Predicated region
    $region10: #{tpu_custom_call.1} parent=1 // pred_check
      _
    $region11: #{tpu_custom_call.1} parent=1 // pred_check_branch
      %39 = sbr.rel (0) target = $region13
    $region12: #{tpu_custom_call.1} parent=1 // pred_region
      %41 = vsyncadd [#allocation8], 0
      %s42 = sshll.u32 %s2, 4
      %s43 = int_to_ptr.hbm [resolvable:$true] %s42
      %s44 = sshll.u32 [#allocation9], 4
      %s45 = int_to_ptr.vmem [resolvable:$true] %s44
      %50 = dma.hbm_to_vmem [thread:$0]  %s43, 1024, %s45, [#allocation8], 64, 64, 4
    $region13: #{tpu_custom_call.1} parent=1 // pred_fallthru
      _
    // Predicated region
    $region14: #{tpu_custom_call.1} parent=1 // pred_check
      _
    $region15: #{tpu_custom_call.1} parent=1 // pred_check_branch
      %52 = sbr.rel (0) target = $region17
    $region16: #{tpu_custom_call.1} parent=1 // pred_region
      %54 = vsyncadd [#allocation11], 0
      %s55 = sshll.u32 %s3, 4
      %s56 = int_to_ptr.hbm [resolvable:$true] %s55
      %s57 = sshll.u32 [#allocation10], 4
      %s58 = int_to_ptr.vmem [resolvable:$true] %s57
      %63 = dma.hbm_to_vmem [thread:$0]  %s56, 1024, %s58, [#allocation11], 64, 64, 4
    $region17: #{tpu_custom_call.1} parent=1 // pred_fallthru
      _
    // Predicated region
    $region18: #{tpu_custom_call.1} parent=1 // pred_check
      _
    $region19: #{tpu_custom_call.1} parent=1 // pred_check_branch
      %65 = sbr.rel (0) target = $region21
    $region20: #{tpu_custom_call.1} parent=1 // pred_region
      _
    $region21: #{tpu_custom_call.1} parent=1 // pred_fallthru
      _
    // Predicated region
    $region22: #{tpu_custom_call.1} parent=1 // pred_check
      _
    $region23: #{tpu_custom_call.1} parent=1 // pred_check_branch
      %67 = sbr.rel (0) target = $region25
    $region24: #{tpu_custom_call.1} parent=1 // pred_region
      %69 = dma.done [#allocation5], 512
    $region25: #{tpu_custom_call.1} parent=1 // pred_fallthru
      _
    // Predicated region
    $region26: #{tpu_custom_call.1} parent=1 // pred_check
      _
    $region27: #{tpu_custom_call.1} parent=1 // pred_check_branch
      %71 = sbr.rel (0) target = $region29
    $region28: #{tpu_custom_call.1} parent=1 // pred_region
      %73 = dma.done [#allocation8], 128
    $region29: #{tpu_custom_call.1} parent=1 // pred_fallthru
      _
    // Predicated region
    $region30: #{tpu_custom_call.1} parent=1 // pred_check
      _
    $region31: #{tpu_custom_call.1} parent=1 // pred_check_branch
      %75 = sbr.rel (0) target = $region33
    $region32: #{tpu_custom_call.1} parent=1 // pred_region
      %77 = dma.done [#allocation8], 1024
    $region33: #{tpu_custom_call.1} parent=1 // pred_fallthru
      _
    // Predicated region
    $region34: #{tpu_custom_call.1} parent=1 // pred_check
      _
    $region35: #{tpu_custom_call.1} parent=1 // pred_check_branch
      %79 = sbr.rel (0) target = $region37
    $region36: #{tpu_custom_call.1} parent=1 // pred_region
      %81 = dma.done [#allocation11], 1024
    $region37: #{tpu_custom_call.1} parent=1 // pred_fallthru
      _
    %p82 = scmp.eq.s32.totalorder 0, 0
    // Predicated region
    $region38: #{tpu_custom_call.1} parent=1 // pred_check
      %p83 = pneg %p82
    $region39: #{tpu_custom_call.1} parent=1 // pred_check_branch
      %85 = sbr.rel (%p83) target = $region41
    $region40: #{tpu_custom_call.1} parent=1 // pred_region
      %v86 = vld [vmem:[#allocation7] sm:$0xff]
      %87 = vst [vmem:[#allocation2] sm:$0xff] %v86
    $region41: #{tpu_custom_call.1} parent=1 // pred_fallthru
      _
    %v88 = vld [vmem:[#allocation4] sm:$0xf]
    %v89 = vld [vmem:[#allocation4 + $0x4] sm:$0xf]
    %v90 = vld [vmem:[#allocation4 + $0x8] sm:$0xf]
    %v91 = vld [vmem:[#allocation4 + $0xc] sm:$0xf]
    %v92 = vld [vmem:[#allocation4 + $0x10] sm:$0xf]
    %v93 = vld [vmem:[#allocation4 + $0x14] sm:$0xf]
    %v94 = vld [vmem:[#allocation4 + $0x18] sm:$0xf]
    %v95 = vld [vmem:[#allocation4 + $0x1c] sm:$0xf]
    %v96 = vld [vmem:[#allocation9] sm:$0xf]
    %v97 = vld [vmem:[#allocation9 + $0x4] sm:$0xf]
    %v98 = vld [vmem:[#allocation9 + $0x8] sm:$0xf]
    %v99 = vld [vmem:[#allocation9 + $0xc] sm:$0xf]
    %v100 = vld [vmem:[#allocation9 + $0x10] sm:$0xf]
    %v101 = vld [vmem:[#allocation9 + $0x14] sm:$0xf]
    %v102 = vld [vmem:[#allocation9 + $0x18] sm:$0xf]
    %v103 = vld [vmem:[#allocation9 + $0x1c] sm:$0xf]
    %v104 = vld [vmem:[#allocation9 + $0x20] sm:$0xf]
    %v105 = vld [vmem:[#allocation9 + $0x24] sm:$0xf]
    %v106 = vld [vmem:[#allocation9 + $0x28] sm:$0xf]
    %v107 = vld [vmem:[#allocation9 + $0x2c] sm:$0xf]
    %v108 = vld [vmem:[#allocation9 + $0x30] sm:$0xf]
    %v109 = vld [vmem:[#allocation9 + $0x34] sm:$0xf]
    %v110 = vld [vmem:[#allocation9 + $0x38] sm:$0xf]
    %v111 = vld [vmem:[#allocation9 + $0x3c] sm:$0xf]
    %v112 = vld [vmem:[%s4] sm:$0x1]
    %v114 = vperm.slane %v112, 0
    %v124 = vunpack.c.l.b16 %v88
    %v125 = vunpack.c.l.b16 %v89
    %v126 = vunpack.c.l.b16 %v90
    %v127 = vunpack.c.l.b16 %v91
    %v128 = vunpack.c.l.b16 %v92
    %v129 = vunpack.c.l.b16 %v93
    %v130 = vunpack.c.l.b16 %v94
    %v131 = vunpack.c.l.b16 %v95
    %v132 = vpack.c.b16 %v125, %v124
    %v133 = vpack.c.b16 %v127, %v126
    %v134 = vpack.c.b16 %v129, %v128
    %v135 = vpack.c.b16 %v131, %v130
    %v156 = vunpack.c.l.b16 %v96
    %v157 = vunpack.c.l.b16 %v97
    %v158 = vunpack.c.l.b16 %v98
    %v159 = vunpack.c.l.b16 %v99
    %v160 = vunpack.c.l.b16 %v100
    %v161 = vunpack.c.l.b16 %v101
    %v162 = vunpack.c.l.b16 %v102
    %v163 = vunpack.c.l.b16 %v103
    %v164 = vunpack.c.l.b16 %v104
    %v165 = vunpack.c.l.b16 %v105
    %v166 = vunpack.c.l.b16 %v106
    %v167 = vunpack.c.l.b16 %v107
    %v168 = vunpack.c.l.b16 %v108
    %v169 = vunpack.c.l.b16 %v109
    %v170 = vunpack.c.l.b16 %v110
    %v171 = vunpack.c.l.b16 %v111
    %v172 = vpack.c.b16 %v157, %v156
    %v173 = vpack.c.b16 %v159, %v158
    %v174 = vpack.c.b16 %v161, %v160
    %v175 = vpack.c.b16 %v163, %v162
    %v176 = vpack.c.b16 %v165, %v164
    %v177 = vpack.c.b16 %v167, %v166
    %v178 = vpack.c.b16 %v169, %v168
    %v179 = vpack.c.b16 %v171, %v170
    %188 = vmatpush.bf16.msra.mxu0 %v179
    %189 = vmatpush.bf16.msra.mxu0 %v178
    %190 = vmatpush.bf16.msra.mxu0 %v177
    %191 = vmatpush.bf16.msra.mxu0 %v176
    %192 = vmatpush.bf16.msra.mxu0 %v175
    %193 = vmatpush.bf16.msra.mxu0 %v174
    %194 = vmatpush.bf16.msra.mxu0 %v173
    %195 = vmatpush.bf16.msra.mxu0 %v172
    %196 = vmatmul.bf16.gmra.mxu0 %v132
    %v197 = vpop.f32.mrf.mxu0
    %v198 = vadd.f32 %v114, %v197
    %v199 = vpop.f32.mrf.mxu0
    %v200 = vadd.f32 %v114, %v199
    %201 = vmatmul.bf16.gmra.mxu0 %v133
    %v202 = vpop.f32.mrf.mxu0
    %v203 = vadd.f32 %v114, %v202
    %v204 = vpop.f32.mrf.mxu0
    %v205 = vadd.f32 %v114, %v204
    %206 = vmatmul.bf16.gmra.mxu0 %v134
    %v207 = vpop.f32.mrf.mxu0
    %v208 = vadd.f32 %v114, %v207
    %v209 = vpop.f32.mrf.mxu0
    %v210 = vadd.f32 %v114, %v209
    %211 = vmatmul.bf16.gmra.mxu0 %v135
    %v212 = vpop.f32.mrf.mxu0
    %v213 = vadd.f32 %v114, %v212
    %v214 = vpop.f32.mrf.mxu0
    %v215 = vadd.f32 %v114, %v214
    %216 = vdwg.mxu0
    %217 = vst [vmem:[#allocation3] sm:$0xff] %v198
    %218 = vst [vmem:[#allocation3 + $0x8] sm:$0xff] %v200
    %219 = vst [vmem:[#allocation3 + $0x10] sm:$0xff] %v203
    %220 = vst [vmem:[#allocation3 + $0x18] sm:$0xff] %v205
    %221 = vst [vmem:[#allocation3 + $0x20] sm:$0xff] %v208
    %222 = vst [vmem:[#allocation3 + $0x28] sm:$0xff] %v210
    %223 = vst [vmem:[#allocation3 + $0x30] sm:$0xff] %v213
    %224 = vst [vmem:[#allocation3 + $0x38] sm:$0xff] %v215
    %v225 = vld [vmem:[#allocation10] sm:$0xf]
    %v226 = vld [vmem:[#allocation10 + $0x4] sm:$0xf]
    %v227 = vld [vmem:[#allocation10 + $0x8] sm:$0xf]
    %v228 = vld [vmem:[#allocation10 + $0xc] sm:$0xf]
    %v229 = vld [vmem:[#allocation10 + $0x10] sm:$0xf]
    %v230 = vld [vmem:[#allocation10 + $0x14] sm:$0xf]
    %v231 = vld [vmem:[#allocation10 + $0x18] sm:$0xf]
    %v232 = vld [vmem:[#allocation10 + $0x1c] sm:$0xf]
    %v233 = vld [vmem:[#allocation10 + $0x20] sm:$0xf]
    %v234 = vld [vmem:[#allocation10 + $0x24] sm:$0xf]
    %v235 = vld [vmem:[#allocation10 + $0x28] sm:$0xf]
    %v236 = vld [vmem:[#allocation10 + $0x2c] sm:$0xf]
    %v237 = vld [vmem:[#allocation10 + $0x30] sm:$0xf]
    %v238 = vld [vmem:[#allocation10 + $0x34] sm:$0xf]
    %v239 = vld [vmem:[#allocation10 + $0x38] sm:$0xf]
    %v240 = vld [vmem:[#allocation10 + $0x3c] sm:$0xf]
    %v241 = vld [vmem:[#allocation2] sm:$0xff]
    %v242 = vpack.c.bf16 %v241, %v241
    %v259 = vunpack.c.l.b16 %v225
    %v260 = vunpack.c.l.b16 %v226
    %v261 = vunpack.c.l.b16 %v227
    %v262 = vunpack.c.l.b16 %v228
    %v263 = vunpack.c.l.b16 %v229
    %v264 = vunpack.c.l.b16 %v230
    %v265 = vunpack.c.l.b16 %v231
    %v266 = vunpack.c.l.b16 %v232
    %v267 = vunpack.c.l.b16 %v233
    %v268 = vunpack.c.l.b16 %v234
    %v269 = vunpack.c.l.b16 %v235
    %v270 = vunpack.c.l.b16 %v236
    %v271 = vunpack.c.l.b16 %v237
    %v272 = vunpack.c.l.b16 %v238
    %v273 = vunpack.c.l.b16 %v239
    %v274 = vunpack.c.l.b16 %v240
    %v275 = vpack.c.b16 %v260, %v259
    %v276 = vpack.c.b16 %v262, %v261
    %v277 = vpack.c.b16 %v264, %v263
    %v278 = vpack.c.b16 %v266, %v265
    %v279 = vpack.c.b16 %v268, %v267
    %v280 = vpack.c.b16 %v270, %v269
    %v281 = vpack.c.b16 %v272, %v271
    %v282 = vpack.c.b16 %v274, %v273
    %291 = vmatpush.bf16.msra.mxu0 %v282
    %292 = vmatpush.bf16.msra.mxu0 %v281
    %293 = vmatpush.bf16.msra.mxu0 %v280
    %294 = vmatpush.bf16.msra.mxu0 %v279
    %295 = vmatpush.bf16.msra.mxu0 %v278
    %296 = vmatpush.bf16.msra.mxu0 %v277
    %297 = vmatpush.bf16.msra.mxu0 %v276
    %298 = vmatpush.bf16.msra.mxu0 %v275
    %299 = vmatmul.bf16.gmra.mxu0 %v242
    %v300 = vpop.f32.mrf.mxu0
    %v301 = vadd.f32 0.0, %v300
    %v302 = vpop.f32.mrf.mxu0
    %303 = vdwg.mxu0
    %v304 = vld [vmem:[#allocation3] sm:$0xff]
    %v305 = vadd.f32 %v304, %v301
    %v306 = vtanh.pop %v305
    %307 = vst [vmem:[#allocation12] sm:$0xff] %v306
    %v308 = vpack.c.bf16 %v306, %v306
    %309 = vmatpush.bf16.msra.mxu0 %v282
    %310 = vmatpush.bf16.msra.mxu0 %v281
    %311 = vmatpush.bf16.msra.mxu0 %v280
    %312 = vmatpush.bf16.msra.mxu0 %v279
    %313 = vmatpush.bf16.msra.mxu0 %v278
    %314 = vmatpush.bf16.msra.mxu0 %v277
    %315 = vmatpush.bf16.msra.mxu0 %v276
    %316 = vmatpush.bf16.msra.mxu0 %v275
    %317 = vmatmul.bf16.gmra.mxu0 %v308
    %v318 = vpop.f32.mrf.mxu0
    %v319 = vadd.f32 0.0, %v318
    %v320 = vpop.f32.mrf.mxu0
    %321 = vdwg.mxu0
    %v322 = vld [vmem:[#allocation3 + $0x8] sm:$0xff]
    %v323 = vadd.f32 %v322, %v319
    %v324 = vtanh.pop %v323
    %325 = vst [vmem:[#allocation12 + $0x8] sm:$0xff] %v324
    %v326 = vpack.c.bf16 %v324, %v324
    %327 = vmatpush.bf16.msra.mxu0 %v282
    %328 = vmatpush.bf16.msra.mxu0 %v281
    %329 = vmatpush.bf16.msra.mxu0 %v280
    %330 = vmatpush.bf16.msra.mxu0 %v279
    %331 = vmatpush.bf16.msra.mxu0 %v278
    %332 = vmatpush.bf16.msra.mxu0 %v277
    %333 = vmatpush.bf16.msra.mxu0 %v276
    %334 = vmatpush.bf16.msra.mxu0 %v275
    %335 = vmatmul.bf16.gmra.mxu0 %v326
    %v336 = vpop.f32.mrf.mxu0
    %v337 = vadd.f32 0.0, %v336
    %v338 = vpop.f32.mrf.mxu0
    %339 = vdwg.mxu0
    %v340 = vld [vmem:[#allocation3 + $0x10] sm:$0xff]
    %v341 = vadd.f32 %v340, %v337
    %v342 = vtanh.pop %v341
    %343 = vst [vmem:[#allocation12 + $0x10] sm:$0xff] %v342
    %v344 = vpack.c.bf16 %v342, %v342
    %345 = vmatpush.bf16.msra.mxu0 %v282
    %346 = vmatpush.bf16.msra.mxu0 %v281
    %347 = vmatpush.bf16.msra.mxu0 %v280
    %348 = vmatpush.bf16.msra.mxu0 %v279
    %349 = vmatpush.bf16.msra.mxu0 %v278
    %350 = vmatpush.bf16.msra.mxu0 %v277
    %351 = vmatpush.bf16.msra.mxu0 %v276
    %352 = vmatpush.bf16.msra.mxu0 %v275
    %353 = vmatmul.bf16.gmra.mxu0 %v344
    %v354 = vpop.f32.mrf.mxu0
    %v355 = vadd.f32 0.0, %v354
    %v356 = vpop.f32.mrf.mxu0
    %357 = vdwg.mxu0
    %v358 = vld [vmem:[#allocation3 + $0x18] sm:$0xff]
    %v359 = vadd.f32 %v358, %v355
    %v360 = vtanh.pop %v359
    %361 = vst [vmem:[#allocation12 + $0x18] sm:$0xff] %v360
    %v362 = vpack.c.bf16 %v360, %v360
    %363 = vmatpush.bf16.msra.mxu0 %v282
    %364 = vmatpush.bf16.msra.mxu0 %v281
    %365 = vmatpush.bf16.msra.mxu0 %v280
    %366 = vmatpush.bf16.msra.mxu0 %v279
    %367 = vmatpush.bf16.msra.mxu0 %v278
    %368 = vmatpush.bf16.msra.mxu0 %v277
    %369 = vmatpush.bf16.msra.mxu0 %v276
    %370 = vmatpush.bf16.msra.mxu0 %v275
    %371 = vmatmul.bf16.gmra.mxu0 %v362
    %v372 = vpop.f32.mrf.mxu0
    %v373 = vadd.f32 0.0, %v372
    %v374 = vpop.f32.mrf.mxu0
    %375 = vdwg.mxu0
    %v376 = vld [vmem:[#allocation3 + $0x20] sm:$0xff]
    %v377 = vadd.f32 %v376, %v373
    %v378 = vtanh.pop %v377
    %379 = vst [vmem:[#allocation12 + $0x20] sm:$0xff] %v378
    %v380 = vpack.c.bf16 %v378, %v378
    %381 = vmatpush.bf16.msra.mxu0 %v282
    %382 = vmatpush.bf16.msra.mxu0 %v281
    %383 = vmatpush.bf16.msra.mxu0 %v280
    %384 = vmatpush.bf16.msra.mxu0 %v279
    %385 = vmatpush.bf16.msra.mxu0 %v278
    %386 = vmatpush.bf16.msra.mxu0 %v277
    %387 = vmatpush.bf16.msra.mxu0 %v276
    %388 = vmatpush.bf16.msra.mxu0 %v275
    %389 = vmatmul.bf16.gmra.mxu0 %v380
    %v390 = vpop.f32.mrf.mxu0
    %v391 = vadd.f32 0.0, %v390
    %v392 = vpop.f32.mrf.mxu0
    %393 = vdwg.mxu0
    %v394 = vld [vmem:[#allocation3 + $0x28] sm:$0xff]
    %v395 = vadd.f32 %v394, %v391
    %v396 = vtanh.pop %v395
    %397 = vst [vmem:[#allocation12 + $0x28] sm:$0xff] %v396
    %v398 = vpack.c.bf16 %v396, %v396
    %399 = vmatpush.bf16.msra.mxu0 %v282
    %400 = vmatpush.bf16.msra.mxu0 %v281
    %401 = vmatpush.bf16.msra.mxu0 %v280
    %402 = vmatpush.bf16.msra.mxu0 %v279
    %403 = vmatpush.bf16.msra.mxu0 %v278
    %404 = vmatpush.bf16.msra.mxu0 %v277
    %405 = vmatpush.bf16.msra.mxu0 %v276
    %406 = vmatpush.bf16.msra.mxu0 %v275
    %407 = vmatmul.bf16.gmra.mxu0 %v398
    %v408 = vpop.f32.mrf.mxu0
    %v409 = vadd.f32 0.0, %v408
    %v410 = vpop.f32.mrf.mxu0
    %411 = vdwg.mxu0
    %v412 = vld [vmem:[#allocation3 + $0x30] sm:$0xff]
    %v413 = vadd.f32 %v412, %v409
    %v414 = vtanh.pop %v413
    %415 = vst [vmem:[#allocation12 + $0x30] sm:$0xff] %v414
    %v416 = vpack.c.bf16 %v414, %v414
    %417 = vmatpush.bf16.msra.mxu0 %v282
    %418 = vmatpush.bf16.msra.mxu0 %v281
    %419 = vmatpush.bf16.msra.mxu0 %v280
    %420 = vmatpush.bf16.msra.mxu0 %v279
    %421 = vmatpush.bf16.msra.mxu0 %v278
    %422 = vmatpush.bf16.msra.mxu0 %v277
    %423 = vmatpush.bf16.msra.mxu0 %v276
    %424 = vmatpush.bf16.msra.mxu0 %v275
    %425 = vmatmul.bf16.gmra.mxu0 %v416
    %v426 = vpop.f32.mrf.mxu0
    %v427 = vadd.f32 0.0, %v426
    %v428 = vpop.f32.mrf.mxu0
    %429 = vdwg.mxu0
    %v430 = vld [vmem:[#allocation3 + $0x38] sm:$0xff]
    %v431 = vadd.f32 %v430, %v427
    %v432 = vtanh.pop %v431
    %433 = vst [vmem:[#allocation12 + $0x38] sm:$0xff] %v432
    %434 = vst [vmem:[#allocation2] sm:$0xff] %v432
    // Predicated region
    $region42: #{tpu_custom_call.1} parent=1 // pred_check
      _
    $region43: #{tpu_custom_call.1} parent=1 // pred_check_branch
      %436 = sbr.rel (0) target = $region45
    $region44: #{tpu_custom_call.1} parent=1 // pred_region
      %438 = vsyncadd [#allocation6], 0
      %s439 = sshll.u32 [#allocation12], 4
      %s440 = int_to_ptr.vmem [resolvable:$true] %s439
      %s441 = sshll.u32 %s5, 4
      %s442 = int_to_ptr.hbm [resolvable:$true] %s441
      %447 = dma.vmem_to_hbm [thread:$0]  %s440, 1024, %s442, [#allocation6], 128, 128, 8
    $region45: #{tpu_custom_call.1} parent=1 // pred_fallthru
      _
    // Predicated region
    $region46: #{tpu_custom_call.1} parent=1 // pred_check
      _
    $region47: #{tpu_custom_call.1} parent=1 // pred_check_branch
      %449 = sbr.rel (0) target = $region49
    $region48: #{tpu_custom_call.1} parent=1 // pred_region
      %451 = dma.done [#allocation6], 1024
    $region49: #{tpu_custom_call.1} parent=1 // pred_fallthru
      _
    %452 = vsyncpa [#allocation5], 1
    %453 = vsyncpa [#allocation8], 1
    %454 = vsyncpa [#allocation11], 1
    %455 = vsyncpa [#allocation6], 1

</llo_original>
